<compile_context>
chip_gen: v5e
topology: v5e:2x2
jax: 0.10.0
libtpu: 0.0.40
codegen_flags: <defaults>
</compile_context>

<pallas_src>
import functools
import math

import jax
import jax.numpy as jnp
from jax import lax
from jax.experimental import pallas as pl
from jax.experimental.pallas import tpu as pltpu


def dot_product_attention_kernel(vlen_ref, q_ref, k_ref, v_ref, o_ref, *, scale):
    """One grid step = one batch element.

    vlen_ref : (B,) int32 SMEM (scalar prefetch)
    q_ref    : (Lq, D)   VMEM
    k_ref    : (Lk, D)   VMEM
    v_ref    : (Lk, Dv)  VMEM
    o_ref    : (Lq, Dv)  VMEM
    """
    b = pl.program_id(0)
    vlen = vlen_ref[b]

    # Fold the 1/sqrt(d) scale into Q once (equivalent to scaling the scores).
    q = q_ref[...].astype(jnp.float32) * jnp.float32(scale)

    # scores = Q @ K^T on the MXU, contracting the feature axes directly.
    s = lax.dot_general(
        q, k_ref[...].astype(jnp.float32),
        dimension_numbers=(((1,), (1,)), ((), ())),
        preferred_element_type=jnp.float32)                      # (Lq, Lk)

    # masked_softmax: positions j >= valid_len are set to 1e-6 (NOT -inf),
    # faithfully reproducing the reference's sequence_mask(value=1e-6).
    j_idx = lax.broadcasted_iota(jnp.int32, s.shape, 1)
    s = jnp.where(j_idx < vlen, s, jnp.float32(1e-6))

    # Numerically-stable softmax over the last axis.
    s = s - jnp.max(s, axis=-1, keepdims=True)
    e = jnp.exp(s)
    denom = jnp.sum(e, axis=-1, keepdims=True)
    a = e * pl.reciprocal(denom, approx=True)                    # (Lq, Lk)

    # dropout(p=0.0) is the identity; output = attn @ V on the MXU.
    o_ref[...] = jnp.dot(a, v_ref[...].astype(jnp.float32),
                         preferred_element_type=jnp.float32).astype(o_ref.dtype)


def dot_product_attention(queries, keys, values, valid_lens):
    """queries (B,Lq,D), keys (B,Lk,D), values (B,Lk,Dv), valid_lens (B,) i32."""
    B, Lq, D = queries.shape
    _, Lk, Dk = keys.shape
    Dv = values.shape[2]
    assert Dk == D and keys.shape[0] == B and values.shape[0] == B
    assert values.shape[1] == Lk

    kernel = functools.partial(dot_product_attention_kernel,
                               scale=1.0 / math.sqrt(D))

    grid_spec = pltpu.PrefetchScalarGridSpec(
        num_scalar_prefetch=1,
        grid=(B,),
        in_specs=[
            pl.BlockSpec((pl.Squeezed(), Lq, D), lambda b, vl: (b, 0, 0)),
            pl.BlockSpec((pl.Squeezed(), Lk, D), lambda b, vl: (b, 0, 0)),
            pl.BlockSpec((pl.Squeezed(), Lk, Dv), lambda b, vl: (b, 0, 0)),
        ],
        out_specs=pl.BlockSpec((pl.Squeezed(), Lq, Dv), lambda b, vl: (b, 0, 0)),
    )

    return pl.pallas_call(
        kernel,
        out_shape=jax.ShapeDtypeStruct((B, Lq, Dv), jnp.float32),
        grid_spec=grid_spec,
        compiler_params=pltpu.CompilerParams(dimension_semantics=("parallel",)),
    )(valid_lens, queries, keys, values)


def dot_product_attention_reference(queries, keys, values, valid_lens):
    """Pure-JAX re-implementation of the PyTorch forward pass (p_dropout=0)."""
    B, Lq, D = queries.shape
    Lk = keys.shape[1]
    s = jnp.einsum('bqd,bkd->bqk', queries, keys) / math.sqrt(D)     # (B,Lq,Lk)
    vl = jnp.repeat(valid_lens, Lq)                                  # (B*Lq,)
    s_flat = s.reshape(-1, Lk)
    mask = jnp.arange(Lk)[None, :] < vl[:, None]
    s_flat = jnp.where(mask, s_flat, jnp.float32(1e-6))
    a = jax.nn.softmax(s_flat.reshape(B, Lq, Lk), axis=-1)
    return jnp.einsum('bqk,bkv->bqv', a, values)


if __name__ == "__main__":
    B = 2          # >= 2 so both TensorCores get a "parallel" block on v7x
    Lq = 128       # query length
    Lk = 128       # key/value length (lane-dense score rows)
    D = 64         # query/key feature dim
    Dv = 128       # value feature dim (lane-dense output stores)

    key = jax.random.PRNGKey(0)
    kq, kk, kv = jax.random.split(key, 3)
    queries = jax.random.normal(kq, (B, Lq, D), jnp.float32)
    keys = jax.random.normal(kk, (B, Lk, D), jnp.float32)
    values = jax.random.normal(kv, (B, Lk, Dv), jnp.float32)
    valid_lens = jnp.array([100, 50], dtype=jnp.int32)

    out = dot_product_attention(queries, keys, values, valid_lens)
    out = jax.block_until_ready(out)

    ref = dot_product_attention_reference(queries, keys, values, valid_lens)
    assert out.shape == (B, Lq, Dv)
    # Tolerance accommodates the EUP approx-reciprocal in the softmax denom.
    assert jnp.allclose(out, ref, atol=5e-3, rtol=5e-3), (
        f"max err {jnp.max(jnp.abs(out - ref))}")
    print("KERNEL_OK")
</pallas_src>

<mosaic_0001>
module attributes {stable_mosaic.version = 11 : i64} {
  func.func @dot_product_attention_kernel(%arg0: i32, %arg1: memref<2xi32, #tpu.memory_space<smem>>, %arg2: memref<1x128x64xf32, #tpu.memory_space<vmem>>, %arg3: memref<1x128x64xf32, #tpu.memory_space<vmem>>, %arg4: memref<1x128x128xf32, #tpu.memory_space<vmem>>, %arg5: memref<1x128x128xf32, #tpu.memory_space<vmem>>) attributes {dimension_semantics = [#tpu.dimension_semantics<parallel>], iteration_bounds = array<i64: 2>, scalar_prefetch = 1 : i64, scratch_operands = 0 : i64, tpu.core_type = #tpu.core_type<tc>, window_params = [{transform_indices = @transform_0, window_bounds = array<i64: 1, 128, 64>}, {transform_indices = @transform_1, window_bounds = array<i64: 1, 128, 64>}, {transform_indices = @transform_2, window_bounds = array<i64: 1, 128, 128>}, {transform_indices = @transform_3, window_bounds = array<i64: 1, 128, 128>}]} {
    %0 = arith.index_cast %arg0 : i32 to index
    %1 = memref.load %arg1[%0] : memref<2xi32, #tpu.memory_space<smem>>
    %c0 = arith.constant 0 : index
    %c0_0 = arith.constant 0 : index
    %c0_1 = arith.constant 0 : index
    %2 = vector.load %arg2[%c0, %c0_0, %c0_1] : memref<1x128x64xf32, #tpu.memory_space<vmem>>, vector<1x128x64xf32>
    %3 = vector.shape_cast %2 : vector<1x128x64xf32> to vector<128x64xf32>
    %cst = arith.constant 1.250000e-01 : f32
    %4 = vector.broadcast %cst : f32 to vector<128x64xf32>
    %5 = arith.mulf %3, %4 : vector<128x64xf32>
    %c0_2 = arith.constant 0 : index
    %c0_3 = arith.constant 0 : index
    %c0_4 = arith.constant 0 : index
    %6 = vector.load %arg3[%c0_2, %c0_3, %c0_4] : memref<1x128x64xf32, #tpu.memory_space<vmem>>, vector<1x128x64xf32>
    %7 = vector.shape_cast %6 : vector<1x128x64xf32> to vector<128x64xf32>
    %cst_5 = arith.constant dense<0.000000e+00> : vector<128x128xf32>
    %8 = tpu.matmul %5, %7, %cst_5 {dimension_numbers = #tpu.dot_dimension_numbers<[1], [1], [0], [0], [0, 0, 1, 0], [], []>} : vector<128x64xf32>, vector<128x64xf32>, vector<128x128xf32> -> vector<128x128xf32>
    %9 = tpu.iota {dimensions = array<i32: 1>} : vector<128x128xi32>
    %10 = vector.broadcast %1 : i32 to vector<128x128xi32>
    %11 = arith.cmpi slt, %9, %10 : vector<128x128xi32>
    %cst_6 = arith.constant 9.99999997E-7 : f32
    %12 = vector.broadcast %cst_6 : f32 to vector<128x128xf32>
    %13 = arith.select %11, %8, %12 : vector<128x128xi1>, vector<128x128xf32>
    %cst_7 = arith.constant dense<0xFF800000> : vector<128xf32>
    %14 = vector.multi_reduction <maximumf>, %13, %cst_7 [1] : vector<128x128xf32> to vector<128xf32>
    %15 = vector.shape_cast %14 : vector<128xf32> to vector<128x1xf32>
    %16 = vector.broadcast %15 : vector<128x1xf32> to vector<128x128xf32>
    %17 = arith.subf %13, %16 : vector<128x128xf32>
    %18 = math.exp %17 : vector<128x128xf32>
    %cst_8 = arith.constant dense<0.000000e+00> : vector<128xf32>
    %19 = vector.multi_reduction <add>, %18, %cst_8 [1] : vector<128x128xf32> to vector<128xf32>
    %20 = vector.shape_cast %19 : vector<128xf32> to vector<128x1xf32>
    %21 = tpu.reciprocal %20 {approx = true} : vector<128x1xf32> -> vector<128x1xf32>
    %22 = vector.broadcast %21 : vector<128x1xf32> to vector<128x128xf32>
    %23 = arith.mulf %18, %22 : vector<128x128xf32>
    %c0_9 = arith.constant 0 : index
    %c0_10 = arith.constant 0 : index
    %c0_11 = arith.constant 0 : index
    %24 = vector.load %arg4[%c0_9, %c0_10, %c0_11] : memref<1x128x128xf32, #tpu.memory_space<vmem>>, vector<1x128x128xf32>
    %25 = vector.shape_cast %24 : vector<1x128x128xf32> to vector<128x128xf32>
    %cst_12 = arith.constant dense<0.000000e+00> : vector<128x128xf32>
    %26 = tpu.matmul %23, %25, %cst_12 {dimension_numbers = #tpu.dot_dimension_numbers<[1], [0], [0], [1], [0, 0, 1, 1], [], []>} : vector<128x128xf32>, vector<128x128xf32>, vector<128x128xf32> -> vector<128x128xf32>
    %c0_13 = arith.constant 0 : index
    %c0_14 = arith.constant 0 : index
    %c0_15 = arith.constant 0 : index
    %27 = vector.load %arg5[%c0_13, %c0_14, %c0_15] : memref<1x128x128xf32, #tpu.memory_space<vmem>>, vector<1x128x128xf32>
    %28 = vector.shape_cast %27 : vector<1x128x128xf32> to vector<128x128xf32>
    %29 = vector.shape_cast %26 : vector<128x128xf32> to vector<1x128x128xf32>
    tpu.vector_store %arg5[%c0_13, %c0_14, %c0_15], %29 {strides = array<i32>} : memref<1x128x128xf32, #tpu.memory_space<vmem>>, vector<1x128x128xf32>,
    return
  }
  func.func @transform_0(%arg0: i32, %arg1: memref<2xi32, #tpu.memory_space<smem>>) -> (i32, i32, i32) {
    %c0_i32 = arith.constant 0 : i32
    %c0_i32_0 = arith.constant 0 : i32
    %c0_i32_1 = arith.constant 0 : i32
    return %arg0, %c0_i32, %c0_i32_0 : i32, i32, i32
  }
  func.func @transform_1(%arg0: i32, %arg1: memref<2xi32, #tpu.memory_space<smem>>) -> (i32, i32, i32) {
    %c0_i32 = arith.constant 0 : i32
    %c0_i32_0 = arith.constant 0 : i32
    %c0_i32_1 = arith.constant 0 : i32
    return %arg0, %c0_i32, %c0_i32_0 : i32, i32, i32
  }
  func.func @transform_2(%arg0: i32, %arg1: memref<2xi32, #tpu.memory_space<smem>>) -> (i32, i32, i32) {
    %c0_i32 = arith.constant 0 : i32
    %c0_i32_0 = arith.constant 0 : i32
    %c0_i32_1 = arith.constant 0 : i32
    return %arg0, %c0_i32, %c0_i32_0 : i32, i32, i32
  }
  func.func @transform_3(%arg0: i32, %arg1: memref<2xi32, #tpu.memory_space<smem>>) -> (i32, i32, i32) {
    %c0_i32 = arith.constant 0 : i32
    %c0_i32_0 = arith.constant 0 : i32
    %c0_i32_1 = arith.constant 0 : i32
    return %arg0, %c0_i32, %c0_i32_0 : i32, i32, i32
  }
}

</mosaic_0001>

<llo_original>
// kernel: tpu_custom_call.1
$region0: #{tpu_custom_call.1}
  #allocation0 [shape = 'u32[]', space=smem, size = 0x4, offset = 0x4, fixed_abs, tag = 'smem constant byte address 0x4 - core index']
  #allocation1 [shape = 'u32[72,128]{1,0:T(1,128)}', space=vmem, size = 0x9000, scoped, tag = 'internal scratch']
  #allocation2 [shape = 's32[1]{0}', space=sflag, size = 0x4, scoped, tag = 'scoped memory for tpu_custom_call.1']
  #allocation3 [shape = 'u8[512]{0}', space=smem, size = 0x200, scoped, tag = 'prefetched SMEM operand 0']
  %s0 = inlined_call_operand.vmem [shape: s32[2], index: 0, kind: input, shape index: {}]
  %s1 = inlined_call_operand.vmem [shape: f32[2,128,64], index: 1, kind: input, shape index: {}]
  %s2 = inlined_call_operand.vmem [shape: f32[2,128,64], index: 2, kind: input, shape index: {}]
  %s3 = inlined_call_operand.vmem [shape: f32[2,128,128], index: 3, kind: input, shape index: {}]
  %s4 = inlined_call_operand.hbm [shape: f32[2,128,128], index: 4, kind: output, shape index: {}]
  %s5 = sld [smem:[#allocation0]]
  $region45: #{tpu_custom_call.1} parent=0
    _
  %s7 = ssub.s32 1, %s5
  %s8 = scalar_select 0, %s7, %s5
  %s10 = sshll.u32 %s0, 4
  %s11 = int_to_ptr.vmem [resolvable:$true] %s10
  %13 = dma.vmem_to_smem %s11, 16, [#allocation3], [#allocation2]
  %15 = dma.done [#allocation2], 16
  %16 = sfence
  $region1: #{tpu_custom_call.1} parent=0
    #allocation4 [shape = 'u8[131072]{0}', space=vmem, size = 0x20000, scoped, tag = 'output window, operand 0']
    #allocation5 [shape = 's32[2]{0}', space=sflag, size = 0x8, scoped, tag = 'scoped memory for tpu_custom_call.1']
    %17 = vsyncpa [#allocation5], 0
    %s18 = scalar_lea.sflag [#allocation5], 1
    %19 = vsyncpa %s18, 0
    loop: start=0, step=1, limit=4
    $region2: #{tpu_custom_call.1} parent=1 // loop_pre_header
      _
    $region3: #{tpu_custom_call.1} parent=1 // loop_header
      %s21 = sphi 0, %s25
      %p22 = scmp.ge.s32.totalorder %s21, 4
      %s31 = sphi 0, %s33
      %s34 = sphi 0, %s31
      %s35 = sphi 0, %s34
      %s51 = sphi 0, %s35
      %s57 = sphi 0, %s59
      %s60 = sphi 0, %s57
      %s61 = sphi 0, %s60
      %s77 = sphi 0, %s61
      %s83 = sphi 0, %s85
      %s86 = sphi 0, %s83
      %s87 = sphi 0, %s86
      %s103 = sphi 0, %s87
      %s109 = sphi 0, %s111
      %s112 = sphi 0, %s109
      %s113 = sphi 0, %s112
      %s129 = sphi 0, %s113
    $region4: #{tpu_custom_call.1} parent=1 // loop_header_branch
      %24 = sbr.rel (%p22) target = $region8
    $region5: #{tpu_custom_call.1} parent=1 // loop_body
      %s26 = ssub.s32 %s21, 1
      %s27 = ssub.s32 %s21, 2
      %s28 = sadd.s32 %s21, 1
      %s29 = ssub.s32 %s21, %s28
      %p30 = scmp.eq.s32.totalorder %s29, 0
      %s32 = sadd.s32 %s31, 1
      %s33 = scalar_select %p30, %s31, %s32
      %p36 = pneg %p30
      %p37 = scmp.eq.s32.totalorder %s21, 1
      %p38 = por %p36, %p37
      %p39 = scmp.ne.s32.totalorder %s31, %s34
      %p40 = scmp.eq.s32.totalorder %s21, 0
      %p41 = por %p39, %p40
      %p42 = scmp.ne.s32.totalorder %s31, %s34
      %p43 = scmp.eq.s32.totalorder %s26, 1
      %p44 = por %p42, %p43
      %p45 = scmp.ne.s32.totalorder %s34, %s35
      %p46 = scmp.eq.s32.totalorder %s26, 0
      %p47 = por %p45, %p46
      %p48 = scmp.ne.s32.totalorder %s34, %s35
      %p49 = scmp.eq.s32.totalorder %s27, 1
      %p50 = por %p48, %p49
      %p52 = scmp.ne.s32.totalorder %s35, %s51
      %p53 = scmp.eq.s32.totalorder %s27, 0
      %p54 = por %p52, %p53
      %s55 = ssub.s32 %s21, %s28
      %p56 = scmp.eq.s32.totalorder %s55, 0
      %s58 = sadd.s32 %s57, 1
      %s59 = scalar_select %p56, %s57, %s58
      %p62 = pneg %p56
      %p63 = scmp.eq.s32.totalorder %s21, 1
      %p64 = por %p62, %p63
      %p65 = scmp.ne.s32.totalorder %s57, %s60
      %p66 = scmp.eq.s32.totalorder %s21, 0
      %p67 = por %p65, %p66
      %p68 = scmp.ne.s32.totalorder %s57, %s60
      %p69 = scmp.eq.s32.totalorder %s26, 1
      %p70 = por %p68, %p69
      %p71 = scmp.ne.s32.totalorder %s60, %s61
      %p72 = scmp.eq.s32.totalorder %s26, 0
      %p73 = por %p71, %p72
      %p74 = scmp.ne.s32.totalorder %s60, %s61
      %p75 = scmp.eq.s32.totalorder %s27, 1
      %p76 = por %p74, %p75
      %p78 = scmp.ne.s32.totalorder %s61, %s77
      %p79 = scmp.eq.s32.totalorder %s27, 0
      %p80 = por %p78, %p79
      %s81 = ssub.s32 %s21, %s28
      %p82 = scmp.eq.s32.totalorder %s81, 0
      %s84 = sadd.s32 %s83, 1
      %s85 = scalar_select %p82, %s83, %s84
      %p88 = pneg %p82
      %p89 = scmp.eq.s32.totalorder %s21, 1
      %p90 = por %p88, %p89
      %p91 = scmp.ne.s32.totalorder %s83, %s86
      %p92 = scmp.eq.s32.totalorder %s21, 0
      %p93 = por %p91, %p92
      %p94 = scmp.ne.s32.totalorder %s83, %s86
      %p95 = scmp.eq.s32.totalorder %s26, 1
      %p96 = por %p94, %p95
      %p97 = scmp.ne.s32.totalorder %s86, %s87
      %p98 = scmp.eq.s32.totalorder %s26, 0
      %p99 = por %p97, %p98
      %p100 = scmp.ne.s32.totalorder %s86, %s87
      %p101 = scmp.eq.s32.totalorder %s27, 1
      %p102 = por %p100, %p101
      %p104 = scmp.ne.s32.totalorder %s87, %s103
      %p105 = scmp.eq.s32.totalorder %s27, 0
      %p106 = por %p104, %p105
      %s107 = ssub.s32 %s21, %s28
      %p108 = scmp.eq.s32.totalorder %s107, 0
      %s110 = sadd.s32 %s109, 1
      %s111 = scalar_select %p108, %s109, %s110
      %p114 = pneg %p108
      %p115 = scmp.eq.s32.totalorder %s21, 1
      %p116 = por %p114, %p115
      %p117 = scmp.ne.s32.totalorder %s109, %s112
      %p118 = scmp.eq.s32.totalorder %s21, 0
      %p119 = por %p117, %p118
      %p120 = scmp.ne.s32.totalorder %s109, %s112
      %p121 = scmp.eq.s32.totalorder %s26, 1
      %p122 = por %p120, %p121
      %p123 = scmp.ne.s32.totalorder %s112, %s113
      %p124 = scmp.eq.s32.totalorder %s26, 0
      %p125 = por %p123, %p124
      %p126 = scmp.ne.s32.totalorder %s112, %s113
      %p127 = scmp.eq.s32.totalorder %s27, 1
      %p128 = por %p126, %p127
      %p130 = scmp.ne.s32.totalorder %s113, %s129
      %p131 = scmp.eq.s32.totalorder %s27, 0
      %p132 = por %p130, %p131
      %p133 = scmp.le.s32.totalorder 1, %s21
      %p134 = scmp.lt.s32.totalorder %s21, 3
      %p135 = pnand %p133, %p134
      %p136 = pneg %p135
      // Predicated region
      $region9: #{tpu_custom_call.1} parent=5 // pred_check
        _
      $region10: #{tpu_custom_call.1} parent=5 // pred_check_branch
        %138 = sbr.rel (%p135) target = $region12
      $region11: #{tpu_custom_call.1} parent=5 // pred_region
        %s139 = ssub.s32 %s21, 1
      $region12: #{tpu_custom_call.1} parent=5 // pred_fallthru
        _
      %p140 = scmp.lt.s32.totalorder %s21, 2
      // Predicated region
      $region13: #{tpu_custom_call.1} parent=5 // pred_check
        %p141 = pneg %p140
      $region14: #{tpu_custom_call.1} parent=5 // pred_check_branch
        %143 = sbr.rel (%p141) target = $region16
      $region15: #{tpu_custom_call.1} parent=5 // pred_region
        // Predicated region
        $region17: #{tpu_custom_call.1} parent=15 // pred_check
          %p144 = pneg %p41
        $region18: #{tpu_custom_call.1} parent=15 // pred_check_branch
          %146 = sbr.rel (%p144) target = $region20
        $region19: #{tpu_custom_call.1} parent=15 // pred_region
          %p147 = scmp.lt.s32.totalorder %s21, 1
          %s148 = scalar_select %p147, %s21, 1
          %s149 = smul.addr %s148, 16
          %s150 = smul.addr %s149, 8
          %s151 = scalar_lea.vmem %s1, %s150
        $region20: #{tpu_custom_call.1} parent=15 // pred_fallthru
          _
        // Predicated region
        $region21: #{tpu_custom_call.1} parent=15 // pred_check
          %p152 = pneg %p67
        $region22: #{tpu_custom_call.1} parent=15 // pred_check_branch
          %154 = sbr.rel (%p152) target = $region24
        $region23: #{tpu_custom_call.1} parent=15 // pred_region
          %p155 = scmp.lt.s32.totalorder %s21, 1
          %s156 = scalar_select %p155, %s21, 1
          %s157 = smul.addr %s156, 16
          %s158 = smul.addr %s157, 8
          %s159 = scalar_lea.vmem %s2, %s158
        $region24: #{tpu_custom_call.1} parent=15 // pred_fallthru
          _
        // Predicated region
        $region25: #{tpu_custom_call.1} parent=15 // pred_check
          %p160 = pneg %p93
        $region26: #{tpu_custom_call.1} parent=15 // pred_check_branch
          %162 = sbr.rel (%p160) target = $region28
        $region27: #{tpu_custom_call.1} parent=15 // pred_region
          %p163 = scmp.lt.s32.totalorder %s21, 1
          %s164 = scalar_select %p163, %s21, 1
          %s165 = smul.addr %s164, 16
          %s166 = smul.addr %s165, 8
          %s167 = scalar_lea.vmem %s3, %s166
        $region28: #{tpu_custom_call.1} parent=15 // pred_fallthru
          _
      $region16: #{tpu_custom_call.1} parent=5 // pred_fallthru
        _
      %p168 = scmp.le.s32.totalorder 1, %s21
      %p169 = scmp.lt.s32.totalorder %s21, 3
      %p170 = pnand %p168, %p169
      %p171 = pneg %p170
      // Predicated region
      $region29: #{tpu_custom_call.1} parent=5 // pred_check
        _
      $region30: #{tpu_custom_call.1} parent=5 // pred_check_branch
        %173 = sbr.rel (%p170) target = $region32
      $region31: #{tpu_custom_call.1} parent=5 // pred_region
        %s174 = ssub.s32 %s21, 1
        %p175 = scmp.lt.s32.totalorder %s26, 1
        %s176 = scalar_select %p175, %s26, 1
        %s177 = smul.addr %s176, 16
        %s178 = smul.addr %s177, 8
        %s179 = scalar_lea.vmem %s1, %s178
        %p180 = pneg %p47
        %p181 = pneg %p44
        %p182 = scmp.lt.s32.totalorder %s26, 1
        %s183 = scalar_select %p182, %s26, 1
        %s184 = smul.addr %s183, 16
        %s185 = smul.addr %s184, 8
        %s186 = scalar_lea.vmem %s2, %s185
        %p187 = pneg %p73
        %p188 = pneg %p70
        %p189 = scmp.lt.s32.totalorder %s26, 1
        %s190 = scalar_select %p189, %s26, 1
        %s191 = smul.addr %s190, 16
        %s192 = smul.addr %s191, 8
        %s193 = scalar_lea.vmem %s3, %s192
        %p194 = pneg %p99
        %p195 = pneg %p96
        %p196 = pneg %p125
        %p197 = pneg %p122
        %s198 = sand.u32 %s112, 1
        %s199 = scalar_lea.sflag [#allocation5], %s198
        %s200 = sand.u32 %s112, 1
        %s201 = smul.addr %s200, 128
        %s202 = scalar_lea.vmem [#allocation4], %s201
        %p203 = scmp.lt.s32.totalorder %s26, 1
        %s204 = scalar_select %p203, %s26, 1
        %s205 = smul.addr %s204, 16
        %s206 = smul.addr %s205, 8
        %s207 = scalar_lea.vmem %s1, %s206
        %p208 = scmp.lt.s32.totalorder %s26, 1
        %s209 = scalar_select %p208, %s26, 1
        %s210 = smul.addr %s209, 16
        %s211 = smul.addr %s210, 8
        %s212 = scalar_lea.vmem %s2, %s211
        %p213 = scmp.lt.s32.totalorder %s26, 1
        %s214 = scalar_select %p213, %s26, 1
        %s215 = smul.addr %s214, 16
        %s216 = smul.addr %s215, 8
        %s217 = scalar_lea.vmem %s3, %s216
        %s218 = sld [smem:[#allocation3 + %s26]]
        %v219 = vld [vmem:[%s207] sm:$0xff]
        %v220 = vld [vmem:[%s207 + $0x8] sm:$0xff]
        %v221 = vld [vmem:[%s207 + $0x10] sm:$0xff]
        %v222 = vld [vmem:[%s207 + $0x18] sm:$0xff]
        %v223 = vld [vmem:[%s207 + $0x20] sm:$0xff]
        %v224 = vld [vmem:[%s207 + $0x28] sm:$0xff]
        %v225 = vld [vmem:[%s207 + $0x30] sm:$0xff]
        %v226 = vld [vmem:[%s207 + $0x38] sm:$0xff]
        %v227 = vld [vmem:[%s207 + $0x40] sm:$0xff]
        %v228 = vld [vmem:[%s207 + $0x48] sm:$0xff]
        %v229 = vld [vmem:[%s207 + $0x50] sm:$0xff]
        %v230 = vld [vmem:[%s207 + $0x58] sm:$0xff]
        %v231 = vld [vmem:[%s207 + $0x60] sm:$0xff]
        %v232 = vld [vmem:[%s207 + $0x68] sm:$0xff]
        %v233 = vld [vmem:[%s207 + $0x70] sm:$0xff]
        %v234 = vld [vmem:[%s207 + $0x78] sm:$0xff]
        %v235 = vmul.f32 %v219, 0.125
        %v236 = vmul.f32 %v220, 0.125
        %v237 = vmul.f32 %v221, 0.125
        %v238 = vmul.f32 %v222, 0.125
        %v239 = vmul.f32 %v223, 0.125
        %v240 = vmul.f32 %v224, 0.125
        %v241 = vmul.f32 %v225, 0.125
        %v242 = vmul.f32 %v226, 0.125
        %v243 = vmul.f32 %v227, 0.125
        %v244 = vmul.f32 %v228, 0.125
        %v245 = vmul.f32 %v229, 0.125
        %v246 = vmul.f32 %v230, 0.125
        %v247 = vmul.f32 %v231, 0.125
        %v248 = vmul.f32 %v232, 0.125
        %v249 = vmul.f32 %v233, 0.125
        %v250 = vmul.f32 %v234, 0.125
        %v251 = vld [vmem:[%s212] sm:$0xff]
        %v252 = vld [vmem:[%s212 + $0x8] sm:$0xff]
        %v253 = vld [vmem:[%s212 + $0x10] sm:$0xff]
        %v254 = vld [vmem:[%s212 + $0x18] sm:$0xff]
        %v255 = vld [vmem:[%s212 + $0x20] sm:$0xff]
        %v256 = vld [vmem:[%s212 + $0x28] sm:$0xff]
        %v257 = vld [vmem:[%s212 + $0x30] sm:$0xff]
        %v258 = vld [vmem:[%s212 + $0x38] sm:$0xff]
        %v259 = vld [vmem:[%s212 + $0x40] sm:$0xff]
        %v260 = vld [vmem:[%s212 + $0x48] sm:$0xff]
        %v261 = vld [vmem:[%s212 + $0x50] sm:$0xff]
        %v262 = vld [vmem:[%s212 + $0x58] sm:$0xff]
        %v263 = vld [vmem:[%s212 + $0x60] sm:$0xff]
        %v264 = vld [vmem:[%s212 + $0x68] sm:$0xff]
        %v265 = vld [vmem:[%s212 + $0x70] sm:$0xff]
        %v266 = vld [vmem:[%s212 + $0x78] sm:$0xff]
        %vm267 = vcmask 523264
        %v269 = vsel %vm267, %v235, 0
        %v272 = vsel %vm267, %v236, 0
        %v275 = vsel %vm267, %v237, 0
        %v278 = vsel %vm267, %v238, 0
        %v281 = vsel %vm267, %v239, 0
        %v284 = vsel %vm267, %v240, 0
        %v287 = vsel %vm267, %v241, 0
        %v290 = vsel %vm267, %v242, 0
        %v293 = vsel %vm267, %v243, 0
        %v296 = vsel %vm267, %v244, 0
        %v299 = vsel %vm267, %v245, 0
        %v302 = vsel %vm267, %v246, 0
        %v305 = vsel %vm267, %v247, 0
        %v308 = vsel %vm267, %v248, 0
        %v311 = vsel %vm267, %v249, 0
        %v314 = vsel %vm267, %v250, 0
        %v317 = vsel %vm267, %v251, 0
        %v320 = vsel %vm267, %v252, 0
        %v323 = vsel %vm267, %v253, 0
        %v326 = vsel %vm267, %v254, 0
        %v329 = vsel %vm267, %v255, 0
        %v332 = vsel %vm267, %v256, 0
        %v335 = vsel %vm267, %v257, 0
        %v338 = vsel %vm267, %v258, 0
        %v341 = vsel %vm267, %v259, 0
        %v344 = vsel %vm267, %v260, 0
        %v347 = vsel %vm267, %v261, 0
        %v350 = vsel %vm267, %v262, 0
        %v353 = vsel %vm267, %v263, 0
        %v356 = vsel %vm267, %v264, 0
        %v359 = vsel %vm267, %v265, 0
        %v362 = vsel %vm267, %v266, 0
        %364 = vmatpush.xpose.msra.mxu0 %v362
        %365 = vmatpush.xpose.msra.mxu0 %v359
        %366 = vmatpush.xpose.msra.mxu0 %v356
        %367 = vmatpush.xpose.msra.mxu0 %v353
        %368 = vmatpush.xpose.msra.mxu0 %v350
        %369 = vmatpush.xpose.msra.mxu0 %v347
        %370 = vmatpush.xpose.msra.mxu0 %v344
        %371 = vmatpush.xpose.msra.mxu0 %v341
        %372 = vmatpush.xpose.msra.mxu0 %v338
        %373 = vmatpush.xpose.msra.mxu0 %v335
        %374 = vmatpush.xpose.msra.mxu0 %v332
        %375 = vmatpush.xpose.msra.mxu0 %v329
        %376 = vmatpush.xpose.msra.mxu0 %v326
        %377 = vmatpush.xpose.msra.mxu0 %v323
        %378 = vmatpush.xpose.msra.mxu0 %v320
        %379 = vmatpush.xpose.msra.mxu0 %v317
        %380 = vmatmul.f32.gmra.mxu0 %v269
        %v381 = vpop.f32.mrf.mxu0
        %v382 = vadd.f32 0.0, %v381
        %383 = vmatmul.f32.gmra.mxu0 %v272
        %v384 = vpop.f32.mrf.mxu0
        %v385 = vadd.f32 0.0, %v384
        %386 = vmatmul.f32.gmra.mxu0 %v275
        %v387 = vpop.f32.mrf.mxu0
        %v388 = vadd.f32 0.0, %v387
        %389 = vmatmul.f32.gmra.mxu0 %v278
        %v390 = vpop.f32.mrf.mxu0
        %v391 = vadd.f32 0.0, %v390
        %392 = vmatmul.f32.gmra.mxu0 %v281
        %v393 = vpop.f32.mrf.mxu0
        %v394 = vadd.f32 0.0, %v393
        %395 = vmatmul.f32.gmra.mxu0 %v284
        %v396 = vpop.f32.mrf.mxu0
        %v397 = vadd.f32 0.0, %v396
        %398 = vmatmul.f32.gmra.mxu0 %v287
        %v399 = vpop.f32.mrf.mxu0
        %v400 = vadd.f32 0.0, %v399
        %401 = vmatmul.f32.gmra.mxu0 %v290
        %v402 = vpop.f32.mrf.mxu0
        %v403 = vadd.f32 0.0, %v402
        %404 = vmatmul.f32.gmra.mxu0 %v293
        %v405 = vpop.f32.mrf.mxu0
        %v406 = vadd.f32 0.0, %v405
        %407 = vmatmul.f32.gmra.mxu0 %v296
        %v408 = vpop.f32.mrf.mxu0
        %v409 = vadd.f32 0.0, %v408
        %410 = vmatmul.f32.gmra.mxu0 %v299
        %v411 = vpop.f32.mrf.mxu0
        %v412 = vadd.f32 0.0, %v411
        %413 = vmatmul.f32.gmra.mxu0 %v302
        %v414 = vpop.f32.mrf.mxu0
        %v415 = vadd.f32 0.0, %v414
        %416 = vmatmul.f32.gmra.mxu0 %v305
        %v417 = vpop.f32.mrf.mxu0
        %v418 = vadd.f32 0.0, %v417
        %419 = vmatmul.f32.gmra.mxu0 %v308
        %v420 = vpop.f32.mrf.mxu0
        %v421 = vadd.f32 0.0, %v420
        %422 = vmatmul.f32.gmra.mxu0 %v311
        %v423 = vpop.f32.mrf.mxu0
        %v424 = vadd.f32 0.0, %v423
        %425 = vmatmul.f32.gmra.mxu0 %v314
        %v426 = vpop.f32.mrf.mxu0
        %v427 = vadd.f32 0.0, %v426
        %428 = vdwg.mxu0
        %v429 = vlaneseq
        %v430 = vand.u32 %v429, 127
        %v431 = vstv %s218
        %vm432 = vcmp.lt.s32.totalorder %v430, %v431
        %v433 = vsel %vm432, %v382, 1e-06
        %v434 = vsel %vm432, %v385, 1e-06
        %v435 = vsel %vm432, %v388, 1e-06
        %v436 = vsel %vm432, %v391, 1e-06
        %v437 = vsel %vm432, %v394, 1e-06
        %v438 = vsel %vm432, %v397, 1e-06
        %v439 = vsel %vm432, %v400, 1e-06
        %v440 = vsel %vm432, %v403, 1e-06
        %v441 = vsel %vm432, %v406, 1e-06
        %v442 = vsel %vm432, %v409, 1e-06
        %v443 = vsel %vm432, %v412, 1e-06
        %v444 = vsel %vm432, %v415, 1e-06
        %v445 = vsel %vm432, %v418, 1e-06
        %v446 = vsel %vm432, %v421, 1e-06
        %v447 = vsel %vm432, %v424, 1e-06
        %v448 = vsel %vm432, %v427, 1e-06
        %449 = vmax.xlane.f32.xlu0 %v433
        %v450 = vpop.xlane.xlu0 %449
        %451 = vmax.xlane.f32.xlu0 %v434
        %v452 = vpop.xlane.xlu0 %451
        %453 = vmax.xlane.f32.xlu0 %v435
        %v454 = vpop.xlane.xlu0 %453
        %455 = vmax.xlane.f32.xlu0 %v436
        %v456 = vpop.xlane.xlu0 %455
        %457 = vmax.xlane.f32.xlu0 %v437
        %v458 = vpop.xlane.xlu0 %457
        %459 = vmax.xlane.f32.xlu0 %v438
        %v460 = vpop.xlane.xlu0 %459
        %461 = vmax.xlane.f32.xlu0 %v439
        %v462 = vpop.xlane.xlu0 %461
        %463 = vmax.xlane.f32.xlu0 %v440
        %v464 = vpop.xlane.xlu0 %463
        %465 = vmax.xlane.f32.xlu0 %v441
        %v466 = vpop.xlane.xlu0 %465
        %467 = vmax.xlane.f32.xlu0 %v442
        %v468 = vpop.xlane.xlu0 %467
        %469 = vmax.xlane.f32.xlu0 %v443
        %v470 = vpop.xlane.xlu0 %469
        %471 = vmax.xlane.f32.xlu0 %v444
        %v472 = vpop.xlane.xlu0 %471
        %473 = vmax.xlane.f32.xlu0 %v445
        %v474 = vpop.xlane.xlu0 %473
        %475 = vmax.xlane.f32.xlu0 %v446
        %v476 = vpop.xlane.xlu0 %475
        %477 = vmax.xlane.f32.xlu0 %v447
        %v478 = vpop.xlane.xlu0 %477
        %479 = vmax.xlane.f32.xlu0 %v448
        %v480 = vpop.xlane.xlu0 %479
        %v481 = vsub.f32 %v433, %v450
        %v482 = vsub.f32 %v434, %v452
        %v483 = vsub.f32 %v435, %v454
        %v484 = vsub.f32 %v436, %v456
        %v485 = vsub.f32 %v437, %v458
        %v486 = vsub.f32 %v438, %v460
        %v487 = vsub.f32 %v439, %v462
        %v488 = vsub.f32 %v440, %v464
        %v489 = vsub.f32 %v441, %v466
        %v490 = vsub.f32 %v442, %v468
        %v491 = vsub.f32 %v443, %v470
        %v492 = vsub.f32 %v444, %v472
        %v493 = vsub.f32 %v445, %v474
        %v494 = vsub.f32 %v446, %v476
        %v495 = vsub.f32 %v447, %v478
        %v496 = vsub.f32 %v448, %v480
        %v497 = vmul.f32 %v481, 1.442695
        %v498 = vpow.pop %v497
        %v499 = vmul.f32 %v482, 1.442695
        %v500 = vpow.pop %v499
        %v501 = vmul.f32 %v483, 1.442695
        %v502 = vpow.pop %v501
        %v503 = vmul.f32 %v484, 1.442695
        %v504 = vpow.pop %v503
        %v505 = vmul.f32 %v485, 1.442695
        %v506 = vpow.pop %v505
        %v507 = vmul.f32 %v486, 1.442695
        %v508 = vpow.pop %v507
        %v509 = vmul.f32 %v487, 1.442695
        %v510 = vpow.pop %v509
        %v511 = vmul.f32 %v488, 1.442695
        %v512 = vpow.pop %v511
        %v513 = vmul.f32 %v489, 1.442695
        %v514 = vpow.pop %v513
        %v515 = vmul.f32 %v490, 1.442695
        %v516 = vpow.pop %v515
        %v517 = vmul.f32 %v491, 1.442695
        %v518 = vpow.pop %v517
        %v519 = vmul.f32 %v492, 1.442695
        %v520 = vpow.pop %v519
        %v521 = vmul.f32 %v493, 1.442695
        %v522 = vpow.pop %v521
        %v523 = vmul.f32 %v494, 1.442695
        %v524 = vpow.pop %v523
        %v525 = vmul.f32 %v495, 1.442695
        %v526 = vpow.pop %v525
        %v527 = vmul.f32 %v496, 1.442695
        %v528 = vpow.pop %v527
        %529 = vadd.xlane.f32.xlu0 %v498
        %v530 = vpop.xlane.xlu0 %529
        %531 = vadd.xlane.f32.xlu0 %v500
        %v532 = vpop.xlane.xlu0 %531
        %533 = vadd.xlane.f32.xlu0 %v502
        %v534 = vpop.xlane.xlu0 %533
        %535 = vadd.xlane.f32.xlu0 %v504
        %v536 = vpop.xlane.xlu0 %535
        %537 = vadd.xlane.f32.xlu0 %v506
        %v538 = vpop.xlane.xlu0 %537
        %539 = vadd.xlane.f32.xlu0 %v508
        %v540 = vpop.xlane.xlu0 %539
        %541 = vadd.xlane.f32.xlu0 %v510
        %v542 = vpop.xlane.xlu0 %541
        %543 = vadd.xlane.f32.xlu0 %v512
        %v544 = vpop.xlane.xlu0 %543
        %545 = vadd.xlane.f32.xlu0 %v514
        %v546 = vpop.xlane.xlu0 %545
        %547 = vadd.xlane.f32.xlu0 %v516
        %v548 = vpop.xlane.xlu0 %547
        %549 = vadd.xlane.f32.xlu0 %v518
        %v550 = vpop.xlane.xlu0 %549
        %551 = vadd.xlane.f32.xlu0 %v520
        %v552 = vpop.xlane.xlu0 %551
        %553 = vadd.xlane.f32.xlu0 %v522
        %v554 = vpop.xlane.xlu0 %553
        %555 = vadd.xlane.f32.xlu0 %v524
        %v556 = vpop.xlane.xlu0 %555
        %557 = vadd.xlane.f32.xlu0 %v526
        %v558 = vpop.xlane.xlu0 %557
        %559 = vadd.xlane.f32.xlu0 %v528
        %v560 = vpop.xlane.xlu0 %559
        %v561 = vrcp.pop %v530
        %v562 = vrcp.pop %v532
        %v563 = vrcp.pop %v534
        %v564 = vrcp.pop %v536
        %v565 = vrcp.pop %v538
        %v566 = vrcp.pop %v540
        %v567 = vrcp.pop %v542
        %v568 = vrcp.pop %v544
        %v569 = vrcp.pop %v546
        %v570 = vrcp.pop %v548
        %v571 = vrcp.pop %v550
        %v572 = vrcp.pop %v552
        %v573 = vrcp.pop %v554
        %v574 = vrcp.pop %v556
        %v575 = vrcp.pop %v558
        %v576 = vrcp.pop %v560
        %v577 = vmul.f32 %v498, %v561
        %v578 = vmul.f32 %v500, %v562
        %v579 = vmul.f32 %v502, %v563
        %v580 = vmul.f32 %v504, %v564
        %v581 = vmul.f32 %v506, %v565
        %v582 = vmul.f32 %v508, %v566
        %v583 = vmul.f32 %v510, %v567
        %v584 = vmul.f32 %v512, %v568
        %v585 = vmul.f32 %v514, %v569
        %v586 = vmul.f32 %v516, %v570
        %v587 = vmul.f32 %v518, %v571
        %v588 = vmul.f32 %v520, %v572
        %v589 = vmul.f32 %v522, %v573
        %v590 = vmul.f32 %v524, %v574
        %v591 = vmul.f32 %v526, %v575
        %v592 = vmul.f32 %v528, %v576
        %v593 = vld [vmem:[%s217] sm:$0xff]
        %v594 = vld [vmem:[%s217 + $0x8] sm:$0xff]
        %v595 = vld [vmem:[%s217 + $0x10] sm:$0xff]
        %v596 = vld [vmem:[%s217 + $0x18] sm:$0xff]
        %v597 = vld [vmem:[%s217 + $0x20] sm:$0xff]
        %v598 = vld [vmem:[%s217 + $0x28] sm:$0xff]
        %v599 = vld [vmem:[%s217 + $0x30] sm:$0xff]
        %v600 = vld [vmem:[%s217 + $0x38] sm:$0xff]
        %v601 = vld [vmem:[%s217 + $0x40] sm:$0xff]
        %v602 = vld [vmem:[%s217 + $0x48] sm:$0xff]
        %v603 = vld [vmem:[%s217 + $0x50] sm:$0xff]
        %v604 = vld [vmem:[%s217 + $0x58] sm:$0xff]
        %v605 = vld [vmem:[%s217 + $0x60] sm:$0xff]
        %v606 = vld [vmem:[%s217 + $0x68] sm:$0xff]
        %v607 = vld [vmem:[%s217 + $0x70] sm:$0xff]
        %v608 = vld [vmem:[%s217 + $0x78] sm:$0xff]
        %609 = vmatpush.msra.mxu0 %v608
        %610 = vmatpush.msra.mxu0 %v607
        %611 = vmatpush.msra.mxu0 %v606
        %612 = vmatpush.msra.mxu0 %v605
        %613 = vmatpush.msra.mxu0 %v604
        %614 = vmatpush.msra.mxu0 %v603
        %615 = vmatpush.msra.mxu0 %v602
        %616 = vmatpush.msra.mxu0 %v601
        %617 = vmatpush.msra.mxu0 %v600
        %618 = vmatpush.msra.mxu0 %v599
        %619 = vmatpush.msra.mxu0 %v598
        %620 = vmatpush.msra.mxu0 %v597
        %621 = vmatpush.msra.mxu0 %v596
        %622 = vmatpush.msra.mxu0 %v595
        %623 = vmatpush.msra.mxu0 %v594
        %624 = vmatpush.msra.mxu0 %v593
        %625 = vmatmul.f32.gmra.mxu0 %v577
        %v626 = vpop.f32.mrf.mxu0
        %v627 = vadd.f32 0.0, %v626
        %628 = vmatmul.f32.gmra.mxu0 %v578
        %v629 = vpop.f32.mrf.mxu0
        %v630 = vadd.f32 0.0, %v629
        %631 = vmatmul.f32.gmra.mxu0 %v579
        %v632 = vpop.f32.mrf.mxu0
        %v633 = vadd.f32 0.0, %v632
        %634 = vmatmul.f32.gmra.mxu0 %v580
        %v635 = vpop.f32.mrf.mxu0
        %v636 = vadd.f32 0.0, %v635
        %637 = vmatmul.f32.gmra.mxu0 %v581
        %v638 = vpop.f32.mrf.mxu0
        %v639 = vadd.f32 0.0, %v638
        %640 = vmatmul.f32.gmra.mxu0 %v582
        %v641 = vpop.f32.mrf.mxu0
        %v642 = vadd.f32 0.0, %v641
        %643 = vmatmul.f32.gmra.mxu0 %v583
        %v644 = vpop.f32.mrf.mxu0
        %v645 = vadd.f32 0.0, %v644
        %646 = vmatmul.f32.gmra.mxu0 %v584
        %v647 = vpop.f32.mrf.mxu0
        %v648 = vadd.f32 0.0, %v647
        %649 = vmatmul.f32.gmra.mxu0 %v585
        %v650 = vpop.f32.mrf.mxu0
        %v651 = vadd.f32 0.0, %v650
        %652 = vmatmul.f32.gmra.mxu0 %v586
        %v653 = vpop.f32.mrf.mxu0
        %v654 = vadd.f32 0.0, %v653
        %655 = vmatmul.f32.gmra.mxu0 %v587
        %v656 = vpop.f32.mrf.mxu0
        %v657 = vadd.f32 0.0, %v656
        %658 = vmatmul.f32.gmra.mxu0 %v588
        %v659 = vpop.f32.mrf.mxu0
        %v660 = vadd.f32 0.0, %v659
        %661 = vmatmul.f32.gmra.mxu0 %v589
        %v662 = vpop.f32.mrf.mxu0
        %v663 = vadd.f32 0.0, %v662
        %664 = vmatmul.f32.gmra.mxu0 %v590
        %v665 = vpop.f32.mrf.mxu0
        %v666 = vadd.f32 0.0, %v665
        %667 = vmatmul.f32.gmra.mxu0 %v591
        %v668 = vpop.f32.mrf.mxu0
        %v669 = vadd.f32 0.0, %v668
        %670 = vmatmul.f32.gmra.mxu0 %v592
        %v671 = vpop.f32.mrf.mxu0
        %v672 = vadd.f32 0.0, %v671
        %673 = vdwg.mxu0
        %674 = vst [vmem:[%s202] sm:$0xff] %v627
        %675 = vst [vmem:[%s202 + $0x8] sm:$0xff] %v630
        %676 = vst [vmem:[%s202 + $0x10] sm:$0xff] %v633
        %677 = vst [vmem:[%s202 + $0x18] sm:$0xff] %v636
        %678 = vst [vmem:[%s202 + $0x20] sm:$0xff] %v639
        %679 = vst [vmem:[%s202 + $0x28] sm:$0xff] %v642
        %680 = vst [vmem:[%s202 + $0x30] sm:$0xff] %v645
        %681 = vst [vmem:[%s202 + $0x38] sm:$0xff] %v648
        %682 = vst [vmem:[%s202 + $0x40] sm:$0xff] %v651
        %683 = vst [vmem:[%s202 + $0x48] sm:$0xff] %v654
        %684 = vst [vmem:[%s202 + $0x50] sm:$0xff] %v657
        %685 = vst [vmem:[%s202 + $0x58] sm:$0xff] %v660
        %686 = vst [vmem:[%s202 + $0x60] sm:$0xff] %v663
        %687 = vst [vmem:[%s202 + $0x68] sm:$0xff] %v666
        %688 = vst [vmem:[%s202 + $0x70] sm:$0xff] %v669
        %689 = vst [vmem:[%s202 + $0x78] sm:$0xff] %v672
        %s690 = sand.u32 %s112, 1
        %s691 = scalar_lea.sflag [#allocation5], %s690
        %s692 = sand.u32 %s112, 1
        %s693 = smul.addr %s692, 128
        %s694 = scalar_lea.vmem [#allocation4], %s693
        // Predicated region
        $region33: #{tpu_custom_call.1} parent=31 // pred_check
          %p695 = pneg %p122
        $region34: #{tpu_custom_call.1} parent=31 // pred_check_branch
          %697 = sbr.rel (%p695) target = $region36
        $region35: #{tpu_custom_call.1} parent=31 // pred_region
          %699 = vsyncadd %s691, 0
          %s700 = smul.addr %s26, 16
          %s701 = smul.addr %s700, 8
          %s702 = scalar_lea.hbm %s4, %s701
          %s703 = sshll.u32 %s694, 4
          %s704 = int_to_ptr.vmem [resolvable:$true] %s703
          %s705 = sshll.u32 %s702, 4
          %s706 = int_to_ptr.hbm [resolvable:$true] %s705
          %711 = dma.vmem_to_hbm [thread:$0]  %s704, 2048, %s706, %s691, 128, 128, 8
        $region36: #{tpu_custom_call.1} parent=31 // pred_fallthru
          _
      $region32: #{tpu_custom_call.1} parent=5 // pred_fallthru
        _
      %p712 = scmp.le.s32.totalorder 2, %s21
      // Predicated region
      $region37: #{tpu_custom_call.1} parent=5 // pred_check
        %p713 = pneg %p712
      $region38: #{tpu_custom_call.1} parent=5 // pred_check_branch
        %715 = sbr.rel (%p713) target = $region40
      $region39: #{tpu_custom_call.1} parent=5 // pred_region
        %s716 = ssub.s32 %s21, 2
        // Predicated region
        $region41: #{tpu_custom_call.1} parent=39 // pred_check
          %p717 = pneg %p128
        $region42: #{tpu_custom_call.1} parent=39 // pred_check_branch
          %719 = sbr.rel (%p717) target = $region44
        $region43: #{tpu_custom_call.1} parent=39 // pred_region
          %s720 = sand.u32 %s113, 1
          %s721 = scalar_lea.sflag [#allocation5], %s720
          %s722 = sand.u32 %s113, 1
          %s723 = smul.addr %s722, 128
          %s724 = scalar_lea.vmem [#allocation4], %s723
          %726 = dma.done %s721, 2048
        $region44: #{tpu_custom_call.1} parent=39 // pred_fallthru
          _
      $region40: #{tpu_custom_call.1} parent=5 // pred_fallthru
        _
    $region6: #{tpu_custom_call.1} parent=1 // loop_footer
      %s25 = sadd.s32 1, %s21
    $region7: #{tpu_custom_call.1} parent=1 // loop_footer_branch
      %20 = sbr.rel target = $region3
    $region8: #{tpu_custom_call.1} parent=1 // loop_exit
      _
    %727 = vsyncpa [#allocation5], 1
    %s728 = scalar_lea.sflag [#allocation5], 1
    %729 = vsyncpa %s728, 1

</llo_original>
